<compile_context>
chip_gen: v7x
topology: tpu7x:2x2x1
jax: 0.10.0
libtpu: 0.0.40
codegen_flags: <defaults>
</compile_context>

<pallas_src>
import math

import jax
import jax.numpy as jnp
from jax import lax
from jax.experimental import pallas as pl
from jax.experimental.pallas import tpu as pltpu

KH, KW = 8, 5          # kernel_size=(8, low_k) with low_k=5
STRIDE_W = 2           # int(low_k / 2)
PAD_W = 2              # round(low_k / 4 + 0.5) = 2
COUT = 192
POOL_W = 5             # MaxPool2d((1, 5))
BN_EPS = 1e-5

TARGET_ROWS = 2048     # target matmul rows (m0) per grid step
MIN_GRID_STEPS = 8     # keep >= ~8 steps total (>=4 per v7x TensorCore) when R allows


def _special_block_kernel(p_ref, w_ref, shift_ref, o_ref):
    # p_ref: (POOL_W, M0, K) bf16 — slice j holds the im2col rows for within-pool
    #        offset j, for every (row, pool-group) pair of this block.
    # w_ref: (K, COUT) bf16, BN scale already folded in.  shift_ref: (1, COUT) f32.
    # One (M0, K)@(K, COUT) MXU matmul per pool offset, f32 accumulate; the max-pool is a
    # running elementwise max (ReLU(x+shift) is monotone, so shift/ReLU commute with the
    # max and are applied once, on the pooled result).  Output stored as bf16.
    w = w_ref[...]
    m = jnp.dot(p_ref[0], w, preferred_element_type=jnp.float32)
    for j in range(1, POOL_W):
        m = jnp.maximum(m, jnp.dot(p_ref[j], w, preferred_element_type=jnp.float32))
    o_ref[...] = jnp.maximum(m + shift_ref[...], 0.0).astype(o_ref.dtype)


def _vmem_capacity_bytes():
    try:
        cap = getattr(pltpu.get_tpu_info(), "vmem_capacity_bytes", None)
        if cap:
            return int(cap)
    except Exception:
        pass
    return 64 * 1024 * 1024      # conservative fallback (v7x per-TensorCore VMEM)


def _choose_tm(R, Wpool, K):
    """Number of (n, h_out) rows handled per grid step, plus the VMEM limit to request."""
    # granularity so m0 = tm*Wpool is a multiple of 16 (bf16 sublane tile; also keeps the
    # 8-sublane alignment of the stored block)
    g = 16 // math.gcd(Wpool, 16)

    # generation-aware VMEM budget (v5e/v6e: 128 MiB physical -> ~96 MiB limit;
    # v7x: 64 MiB physical -> ~48 MiB limit)
    cap = _vmem_capacity_bytes()
    vmem_limit = max(32 * 1024 * 1024, min(cap * 3 // 4, cap - (8 << 20)))
    budget = int(vmem_limit * 0.85)

    # lane/sublane padding: K=160 and COUT=192 both occupy 256 lanes in VMEM
    lanes_k = pl.cdiv(K, 128) * 128
    lanes_co = pl.cdiv(COUT, 128) * 128

    def _block_bytes(t):
        m0 = pl.cdiv(t * Wpool, 16) * 16
        patch = 2 * POOL_W * m0 * lanes_k * 2          # double-buffered bf16 patch block
        outb = 2 * m0 * lanes_co * 2                   # double-buffered bf16 output block
        wts = 2 * (pl.cdiv(K, 16) * 16) * lanes_co * 2 + 2 * 8 * lanes_co * 4
        return patch + outb + wts

    tm_target = pl.cdiv(TARGET_ROWS, Wpool)            # ~2048 matmul rows per step
    tm_steps = max(1, R // MIN_GRID_STEPS)             # but keep >= ~8 steps when R is big
    tm = max(g, min(tm_target, tm_steps))
    tm = pl.cdiv(tm, g) * g

    while tm > g and _block_bytes(tm) > budget:        # safety net (rarely binds)
        tm = max(g, (tm // 2) // g * g)
    return tm, vmem_limit


def special_block_forward(x, weight, gamma, beta, run_mean, run_var):
    # x: (N, C, H, W) float32 ; weight: (COUT, C, KH, KW) (PyTorch OIHW layout)
    N, C, H, W = x.shape
    Hout = H - KH + 1
    Wout = (W + 2 * PAD_W - KW) // STRIDE_W + 1
    Wpool = Wout // POOL_W
    W_used = Wpool * POOL_W          # conv columns that survive the (1, 5) max-pool
    R = N * Hout
    K = C * KH * KW

    # --- im2col over the W_used pooled columns, built directly in the kernel's layout.
    # Cast to bf16 BEFORE the gather so every inflated intermediate is half-size; one
    # stack + one transpose (no f32 intermediates, no second regroup pass).
    x_pad = jnp.pad(x, ((0, 0), (0, 0), (0, 0), (PAD_W, PAD_W))).astype(jnp.bfloat16)
    cols = [x_pad[:, :, kh:kh + Hout,
                  kw:kw + STRIDE_W * (W_used - 1) + 1:STRIDE_W]
            for kh in range(KH) for kw in range(KW)]          # each (N, C, Hout, W_used)
    stacked = jnp.stack(cols, axis=0)                         # (KH*KW, N, C, Hout, W_used)
    stacked = stacked.reshape(KH * KW, N, C, Hout, Wpool, POOL_W)
    # -> (POOL_W, N, Hout, Wpool, C, KH*KW): rows (n, ho, wp), K ordered (c, kh, kw)
    # matching PyTorch's weight.reshape(COUT, K) flattening.
    patches = stacked.transpose(5, 1, 3, 4, 2, 0).reshape(POOL_W, R * Wpool, K)

    # --- fold BN (inference) scale into the conv weights; keep +shift / ReLU in-kernel
    inv_std = 1.0 / jnp.sqrt(run_var.astype(jnp.float32) + BN_EPS)
    scale = gamma.astype(jnp.float32) * inv_std                                # (COUT,)
    shift = (beta.astype(jnp.float32)
             - run_mean.astype(jnp.float32) * scale).reshape(1, COUT)          # (1, COUT)
    w_mat = (weight.reshape(COUT, K).astype(jnp.float32) * scale[:, None]).T
    w_mat = w_mat.astype(jnp.bfloat16)                                         # (K, COUT)

    tm, vmem_limit = _choose_tm(R, Wpool, K)
    R_pad = pl.cdiv(R, tm) * tm
    if R_pad != R:   # zero-padded rows; their outputs are sliced off below
        patches = jnp.pad(patches, ((0, 0), (0, (R_pad - R) * Wpool), (0, 0)))
    m0 = tm * Wpool
    grid = (R_pad // tm,)

    cost = pl.CostEstimate(
        flops=2 * R_pad * W_used * K * COUT,
        transcendentals=0,
        bytes_accessed=(patches.size * 2 + w_mat.size * 2 + shift.size * 4
                        + R_pad * Wpool * COUT * 2))

    out = pl.pallas_call(
        _special_block_kernel,
        out_shape=jax.ShapeDtypeStruct((R_pad * Wpool, COUT), jnp.bfloat16),
        grid_spec=pltpu.PrefetchScalarGridSpec(
            num_scalar_prefetch=0,
            grid=grid,
            in_specs=[
                pl.BlockSpec((POOL_W, m0, K), lambda i: (0, i, 0)),  # im2col patches
                pl.BlockSpec((K, COUT), lambda i: (0, 0)),           # BN-folded weights
                pl.BlockSpec((1, COUT), lambda i: (0, 0)),           # BN shift
            ],
            out_specs=pl.BlockSpec((m0, COUT), lambda i: (i, 0)),
        ),
        compiler_params=pltpu.CompilerParams(
            dimension_semantics=("parallel",),
            vmem_limit_bytes=int(vmem_limit)),
        cost_estimate=cost,
    )(patches, w_mat, shift)

    # (R*Wpool, COUT) bf16 slab -> NCHW (N, COUT, Hout, Wpool); cast the (small) pooled
    # output back to f32 only at the very end.
    out = out[:R * Wpool].reshape(N, Hout, Wpool, COUT).transpose(0, 3, 1, 2)
    return out.astype(jnp.float32)


def _reference(x, weight, gamma, beta, run_mean, run_var):
    y = lax.conv_general_dilated(
        x, weight, window_strides=(1, STRIDE_W),
        padding=((0, 0), (PAD_W, PAD_W)),
        dimension_numbers=("NCHW", "OIHW", "NCHW"))
    scale = gamma / jnp.sqrt(run_var + BN_EPS)
    shift = beta - run_mean * scale
    y = y * scale[None, :, None, None] + shift[None, :, None, None]
    y = jnp.maximum(y, 0.0)
    y = lax.reduce_window(y, -jnp.inf, lax.max,
                          window_dimensions=(1, 1, 1, POOL_W),
                          window_strides=(1, 1, 1, POOL_W),
                          padding="VALID")
    return y


if __name__ == "__main__":
    key = jax.random.PRNGKey(0)
    kx, kw, kg, kb, km, kv = jax.random.split(key, 6)

    N, C, H, W = 2, 4, 16, 64   # small shapes consistent with the module (H >= kernel height 8)
    x = jax.random.normal(kx, (N, C, H, W), dtype=jnp.float32)
    weight = 0.05 * jax.random.normal(kw, (COUT, C, KH, KW), dtype=jnp.float32)
    gamma = 1.0 + 0.1 * jax.random.normal(kg, (COUT,), dtype=jnp.float32)
    beta = 0.1 * jax.random.normal(kb, (COUT,), dtype=jnp.float32)
    run_mean = 0.1 * jax.random.normal(km, (COUT,), dtype=jnp.float32)
    run_var = jnp.abs(jax.random.normal(kv, (COUT,), dtype=jnp.float32)) + 0.5

    fwd = jax.jit(special_block_forward)
    out = jax.block_until_ready(fwd(x, weight, gamma, beta, run_mean, run_var))

    ref = _reference(x, weight, gamma, beta, run_mean, run_var)
    Hout = H - KH + 1
    Wpool = ((W + 2 * PAD_W - KW) // STRIDE_W + 1) // POOL_W
    assert out.shape == (N, COUT, Hout, Wpool), out.shape
    # bf16 matmul operands + bf16 kernel output (f32 accumulate) vs f32 reference
    assert jnp.allclose(out, ref, rtol=2e-2, atol=2e-2), "mismatch vs reference"
    print("KERNEL_OK")
</pallas_src>

<mosaic_0001>
module attributes {stable_mosaic.version = 11 : i64} {
  func.func @_special_block_kernel(%arg0: i32, %arg1: memref<5x48x160xbf16, #tpu.memory_space<vmem>>, %arg2: memref<160x192xbf16, #tpu.memory_space<vmem>>, %arg3: memref<1x192xf32, #tpu.memory_space<vmem>>, %arg4: memref<48x192xbf16, #tpu.memory_space<vmem>>) attributes {dimension_semantics = [#tpu.dimension_semantics<parallel>], iteration_bounds = array<i64: 3>, scalar_prefetch = 0 : i64, scratch_operands = 0 : i64, tpu.core_type = #tpu.core_type<tc>, window_params = [{transform_indices = @transform_0, window_bounds = array<i64: 5, 48, 160>}, {pipeline_mode = #tpu.pipeline_mode<synchronous>, transform_indices = @transform_1, window_bounds = array<i64: 160, 192>}, {pipeline_mode = #tpu.pipeline_mode<synchronous>, transform_indices = @transform_2, window_bounds = array<i64: 1, 192>}, {transform_indices = @transform_3, window_bounds = array<i64: 48, 192>}]} {
    %c0 = arith.constant 0 : index
    %c0_0 = arith.constant 0 : index
    %0 = vector.load %arg2[%c0, %c0_0] : memref<160x192xbf16, #tpu.memory_space<vmem>>, vector<160x192xbf16>
    %c0_1 = arith.constant 0 : index
    %c0_2 = arith.constant 0 : index
    %c0_3 = arith.constant 0 : index
    %1 = vector.load %arg1[%c0_1, %c0_2, %c0_3] : memref<5x48x160xbf16, #tpu.memory_space<vmem>>, vector<1x48x160xbf16>
    %2 = vector.shape_cast %1 : vector<1x48x160xbf16> to vector<48x160xbf16>
    %cst = arith.constant dense<0.000000e+00> : vector<48x192xf32>
    %3 = tpu.matmul %2, %0, %cst {dimension_numbers = #tpu.dot_dimension_numbers<[1], [0], [0], [1], [0, 0, 1, 1], [], []>} : vector<48x160xbf16>, vector<160x192xbf16>, vector<48x192xf32> -> vector<48x192xf32>
    %c1 = arith.constant 1 : index
    %c0_4 = arith.constant 0 : index
    %c0_5 = arith.constant 0 : index
    %4 = vector.load %arg1[%c1, %c0_4, %c0_5] : memref<5x48x160xbf16, #tpu.memory_space<vmem>>, vector<1x48x160xbf16>
    %5 = vector.shape_cast %4 : vector<1x48x160xbf16> to vector<48x160xbf16>
    %cst_6 = arith.constant dense<0.000000e+00> : vector<48x192xf32>
    %6 = tpu.matmul %5, %0, %cst_6 {dimension_numbers = #tpu.dot_dimension_numbers<[1], [0], [0], [1], [0, 0, 1, 1], [], []>} : vector<48x160xbf16>, vector<160x192xbf16>, vector<48x192xf32> -> vector<48x192xf32>
    %7 = arith.maximumf %3, %6 : vector<48x192xf32>
    %c2 = arith.constant 2 : index
    %c0_7 = arith.constant 0 : index
    %c0_8 = arith.constant 0 : index
    %8 = vector.load %arg1[%c2, %c0_7, %c0_8] : memref<5x48x160xbf16, #tpu.memory_space<vmem>>, vector<1x48x160xbf16>
    %9 = vector.shape_cast %8 : vector<1x48x160xbf16> to vector<48x160xbf16>
    %cst_9 = arith.constant dense<0.000000e+00> : vector<48x192xf32>
    %10 = tpu.matmul %9, %0, %cst_9 {dimension_numbers = #tpu.dot_dimension_numbers<[1], [0], [0], [1], [0, 0, 1, 1], [], []>} : vector<48x160xbf16>, vector<160x192xbf16>, vector<48x192xf32> -> vector<48x192xf32>
    %11 = arith.maximumf %7, %10 : vector<48x192xf32>
    %c3 = arith.constant 3 : index
    %c0_10 = arith.constant 0 : index
    %c0_11 = arith.constant 0 : index
    %12 = vector.load %arg1[%c3, %c0_10, %c0_11] : memref<5x48x160xbf16, #tpu.memory_space<vmem>>, vector<1x48x160xbf16>
    %13 = vector.shape_cast %12 : vector<1x48x160xbf16> to vector<48x160xbf16>
    %cst_12 = arith.constant dense<0.000000e+00> : vector<48x192xf32>
    %14 = tpu.matmul %13, %0, %cst_12 {dimension_numbers = #tpu.dot_dimension_numbers<[1], [0], [0], [1], [0, 0, 1, 1], [], []>} : vector<48x160xbf16>, vector<160x192xbf16>, vector<48x192xf32> -> vector<48x192xf32>
    %15 = arith.maximumf %11, %14 : vector<48x192xf32>
    %c4 = arith.constant 4 : index
    %c0_13 = arith.constant 0 : index
    %c0_14 = arith.constant 0 : index
    %16 = vector.load %arg1[%c4, %c0_13, %c0_14] : memref<5x48x160xbf16, #tpu.memory_space<vmem>>, vector<1x48x160xbf16>
    %17 = vector.shape_cast %16 : vector<1x48x160xbf16> to vector<48x160xbf16>
    %cst_15 = arith.constant dense<0.000000e+00> : vector<48x192xf32>
    %18 = tpu.matmul %17, %0, %cst_15 {dimension_numbers = #tpu.dot_dimension_numbers<[1], [0], [0], [1], [0, 0, 1, 1], [], []>} : vector<48x160xbf16>, vector<160x192xbf16>, vector<48x192xf32> -> vector<48x192xf32>
    %19 = arith.maximumf %15, %18 : vector<48x192xf32>
    %c0_16 = arith.constant 0 : index
    %c0_17 = arith.constant 0 : index
    %20 = vector.load %arg3[%c0_16, %c0_17] : memref<1x192xf32, #tpu.memory_space<vmem>>, vector<1x192xf32>
    %21 = vector.broadcast %20 : vector<1x192xf32> to vector<48x192xf32>
    %22 = arith.addf %19, %21 : vector<48x192xf32>
    %cst_18 = arith.constant 0.000000e+00 : f32
    %23 = vector.broadcast %cst_18 : f32 to vector<48x192xf32>
    %24 = arith.maximumf %22, %23 : vector<48x192xf32>
    %25 = arith.truncf %24 : vector<48x192xf32> to vector<48x192xbf16>
    %c0_19 = arith.constant 0 : index
    %c0_20 = arith.constant 0 : index
    %26 = vector.load %arg4[%c0_19, %c0_20] : memref<48x192xbf16, #tpu.memory_space<vmem>>, vector<48x192xbf16>
    tpu.vector_store %arg4[%c0_19, %c0_20], %25 {strides = array<i32>} : memref<48x192xbf16, #tpu.memory_space<vmem>>, vector<48x192xbf16>,
    return
  }
  func.func @transform_0(%arg0: i32) -> (i32, i32, i32) {
    %c0_i32 = arith.constant 0 : i32
    %c0_i32_0 = arith.constant 0 : i32
    %c0_i32_1 = arith.constant 0 : i32
    return %c0_i32, %arg0, %c0_i32_0 : i32, i32, i32
  }
  func.func @transform_1(%arg0: i32) -> (i32, i32) {
    %c0_i32 = arith.constant 0 : i32
    %c0_i32_0 = arith.constant 0 : i32
    %c0_i32_1 = arith.constant 0 : i32
    return %c0_i32, %c0_i32_0 : i32, i32
  }
  func.func @transform_2(%arg0: i32) -> (i32, i32) {
    %c0_i32 = arith.constant 0 : i32
    %c0_i32_0 = arith.constant 0 : i32
    %c0_i32_1 = arith.constant 0 : i32
    return %c0_i32, %c0_i32_0 : i32, i32
  }
  func.func @transform_3(%arg0: i32) -> (i32, i32) {
    %c0_i32 = arith.constant 0 : i32
    %c0_i32_0 = arith.constant 0 : i32
    return %arg0, %c0_i32 : i32, i32
  }
}

</mosaic_0001>

<llo_original>
// kernel: special_block_forward.1
$region0: #{special_block_forward.1}
  #allocation0 [shape = 'u32[]', space=smem, size = 0x4, offset = 0x4, fixed_abs, tag = 'smem constant byte address 0x4 - core index']
  #allocation1 [shape = 'u32[144,128]{1,0:T(1,128)}', space=vmem, size = 0x12000, scoped, tag = 'internal scratch']
  %s0 = inlined_call_operand.vmem [shape: bf16[5,144,160], index: 0, kind: input, shape index: {}]
  %s1 = inlined_call_operand.vmem [shape: bf16[160,192], index: 1, kind: input, shape index: {}]
  %s2 = inlined_call_operand.vmem [shape: f32[1,192], index: 2, kind: input, shape index: {}]
  %s3 = inlined_call_operand.vmem [shape: bf16[144,192], index: 3, kind: output, shape index: {}]
  %s4 = sld [smem:[#allocation0]]
  $region83: #{special_block_forward.1} parent=0
    _
  %s6 = ssub.s32 1, %s4
  %s7 = scalar_select 0, %s6, %s4
  $region1: #{special_block_forward.1} parent=0
    #allocation2 [shape = 'u8[245760]{0}', space=vmem, size = 0x3c000, scoped, tag = 'input window, operand 0']
    loop: start=0, step=1, limit=5
    $region2: #{special_block_forward.1} parent=1 // loop_pre_header
      _
    $region3: #{special_block_forward.1} parent=1 // loop_header
      %s9 = sphi 0, %s13
      %p10 = scmp.ge.s32.totalorder %s9, 5
      %s19 = sphi 0, %s21
      %s22 = sphi 0, %s19
      %s23 = sphi 0, %s22
      %s39 = sphi 0, %s23
      %s43 = sphi 0, %s43
      %s45 = sphi 0, %s43
      %s46 = sphi 0, %s45
      %s60 = sphi 0, %s46
      %s64 = sphi 0, %s64
      %s66 = sphi 0, %s64
      %s67 = sphi 0, %s66
      %s81 = sphi 0, %s67
      %s87 = sphi 0, %s89
      %s90 = sphi 0, %s87
      %s91 = sphi 0, %s90
      %s107 = sphi 0, %s91
    $region4: #{special_block_forward.1} parent=1 // loop_header_branch
      %12 = sbr.rel (%p10) target = $region8
    $region5: #{special_block_forward.1} parent=1 // loop_body
      %s14 = ssub.s32 %s9, 1
      %s15 = ssub.s32 %s9, 2
      %s16 = sadd.s32 %s9, 1
      %s17 = ssub.s32 %s9, %s16
      %p18 = scmp.eq.s32.totalorder %s17, 0
      %s20 = sadd.s32 %s19, 1
      %s21 = scalar_select %p18, %s19, %s20
      %p24 = pneg %p18
      %p25 = scmp.eq.s32.totalorder %s9, 2
      %p26 = por %p24, %p25
      %p27 = scmp.ne.s32.totalorder %s19, %s22
      %p28 = scmp.eq.s32.totalorder %s9, 0
      %p29 = por %p27, %p28
      %p30 = scmp.ne.s32.totalorder %s19, %s22
      %p31 = scmp.eq.s32.totalorder %s14, 2
      %p32 = por %p30, %p31
      %p33 = scmp.ne.s32.totalorder %s22, %s23
      %p34 = scmp.eq.s32.totalorder %s14, 0
      %p35 = por %p33, %p34
      %p36 = scmp.ne.s32.totalorder %s22, %s23
      %p37 = scmp.eq.s32.totalorder %s15, 2
      %p38 = por %p36, %p37
      %p40 = scmp.ne.s32.totalorder %s23, %s39
      %p41 = scmp.eq.s32.totalorder %s15, 0
      %p42 = por %p40, %p41
      %s44 = sadd.s32 %s43, 1
      %p47 = scmp.eq.s32.totalorder %s9, 2
      %p48 = scmp.ne.s32.totalorder %s43, %s45
      %p49 = scmp.eq.s32.totalorder %s9, 0
      %p50 = por %p48, %p49
      %p51 = scmp.ne.s32.totalorder %s43, %s45
      %p52 = scmp.eq.s32.totalorder %s14, 2
      %p53 = por %p51, %p52
      %p54 = scmp.ne.s32.totalorder %s45, %s46
      %p55 = scmp.eq.s32.totalorder %s14, 0
      %p56 = por %p54, %p55
      %p57 = scmp.ne.s32.totalorder %s45, %s46
      %p58 = scmp.eq.s32.totalorder %s15, 2
      %p59 = por %p57, %p58
      %p61 = scmp.ne.s32.totalorder %s46, %s60
      %p62 = scmp.eq.s32.totalorder %s15, 0
      %p63 = por %p61, %p62
      %s65 = sadd.s32 %s64, 1
      %p68 = scmp.eq.s32.totalorder %s9, 2
      %p69 = scmp.ne.s32.totalorder %s64, %s66
      %p70 = scmp.eq.s32.totalorder %s9, 0
      %p71 = por %p69, %p70
      %p72 = scmp.ne.s32.totalorder %s64, %s66
      %p73 = scmp.eq.s32.totalorder %s14, 2
      %p74 = por %p72, %p73
      %p75 = scmp.ne.s32.totalorder %s66, %s67
      %p76 = scmp.eq.s32.totalorder %s14, 0
      %p77 = por %p75, %p76
      %p78 = scmp.ne.s32.totalorder %s66, %s67
      %p79 = scmp.eq.s32.totalorder %s15, 2
      %p80 = por %p78, %p79
      %p82 = scmp.ne.s32.totalorder %s67, %s81
      %p83 = scmp.eq.s32.totalorder %s15, 0
      %p84 = por %p82, %p83
      %s85 = ssub.s32 %s9, %s16
      %p86 = scmp.eq.s32.totalorder %s85, 0
      %s88 = sadd.s32 %s87, 1
      %s89 = scalar_select %p86, %s87, %s88
      %p92 = pneg %p86
      %p93 = scmp.eq.s32.totalorder %s9, 2
      %p94 = por %p92, %p93
      %p95 = scmp.ne.s32.totalorder %s87, %s90
      %p96 = scmp.eq.s32.totalorder %s9, 0
      %p97 = por %p95, %p96
      %p98 = scmp.ne.s32.totalorder %s87, %s90
      %p99 = scmp.eq.s32.totalorder %s14, 2
      %p100 = por %p98, %p99
      %p101 = scmp.ne.s32.totalorder %s90, %s91
      %p102 = scmp.eq.s32.totalorder %s14, 0
      %p103 = por %p101, %p102
      %p104 = scmp.ne.s32.totalorder %s90, %s91
      %p105 = scmp.eq.s32.totalorder %s15, 2
      %p106 = por %p104, %p105
      %p108 = scmp.ne.s32.totalorder %s91, %s107
      %p109 = scmp.eq.s32.totalorder %s15, 0
      %p110 = por %p108, %p109
      %p111 = scmp.le.s32.totalorder 1, %s9
      %p112 = scmp.lt.s32.totalorder %s9, 4
      %p113 = pnand %p111, %p112
      %p114 = pneg %p113
      // Predicated region
      $region9: #{special_block_forward.1} parent=5 // pred_check
        _
      $region10: #{special_block_forward.1} parent=5 // pred_check_branch
        %116 = sbr.rel (%p113) target = $region12
      $region11: #{special_block_forward.1} parent=5 // pred_region
        %s117 = ssub.s32 %s9, 1
        // Predicated region
        $region13: #{special_block_forward.1} parent=11 // pred_check
          %p118 = pneg %p56
        $region14: #{special_block_forward.1} parent=11 // pred_check_branch
          %120 = sbr.rel (%p118) target = $region16
        $region15: #{special_block_forward.1} parent=11 // pred_region
          _
        $region16: #{special_block_forward.1} parent=11 // pred_fallthru
          _
        // Predicated region
        $region17: #{special_block_forward.1} parent=11 // pred_check
          %p121 = pneg %p77
        $region18: #{special_block_forward.1} parent=11 // pred_check_branch
          %123 = sbr.rel (%p121) target = $region20
        $region19: #{special_block_forward.1} parent=11 // pred_region
          _
        $region20: #{special_block_forward.1} parent=11 // pred_fallthru
          _
      $region12: #{special_block_forward.1} parent=5 // pred_fallthru
        _
      %p124 = scmp.lt.s32.totalorder %s9, 3
      // Predicated region
      $region21: #{special_block_forward.1} parent=5 // pred_check
        %p125 = pneg %p124
      $region22: #{special_block_forward.1} parent=5 // pred_check_branch
        %127 = sbr.rel (%p125) target = $region24
      $region23: #{special_block_forward.1} parent=5 // pred_region
        // Predicated region
        $region25: #{special_block_forward.1} parent=23 // pred_check
          %p128 = pneg %p29
        $region26: #{special_block_forward.1} parent=23 // pred_check_branch
          %130 = sbr.rel (%p128) target = $region28
        $region27: #{special_block_forward.1} parent=23 // pred_region
          %s131 = sand.u32 %s19, 1
          %s132 = sand.u32 %s19, 1
          %s133 = smul.addr %s132, 240
          %s134 = scalar_lea.vmem [#allocation2], %s133
          %s135 = smul.u32 6, %s9
          %s136 = smul.addr %s135, 2
          %s137 = smul.addr %s136, 4
          %s138 = scalar_lea.vmem %s0, %s137
          // Predicated region
          $region29: #{special_block_forward.1} parent=27 // pred_check
            _
          $region30: #{special_block_forward.1} parent=27 // pred_check_branch
            %140 = sbr.rel (0) target = $region32
          $region31: #{special_block_forward.1} parent=27 // pred_region
            // Predicated region
            $region33: #{special_block_forward.1} parent=31 // pred_check
              _
            $region34: #{special_block_forward.1} parent=31 // pred_check_branch
              %142 = sbr.rel (0) target = $region36
            $region35: #{special_block_forward.1} parent=31 // pred_region
              // Predicated region
              $region48: #{special_block_forward.1} parent=35 // pred_check
                _
              $region49: #{special_block_forward.1} parent=35 // pred_check_branch
                %215 = sbr.rel (0) target = $region51
              $region50: #{special_block_forward.1} parent=35 // pred_region
                loop: start=0, step=1, limit=1
                $region52: #{special_block_forward.1} parent=50 // loop_pre_header
                  _
                $region53: #{special_block_forward.1} parent=50 // loop_header
                  %s217 = sphi 0, %s221
                  %p218 = scmp.ge.s32.totalorder %s217, 1
                  %s222 = sphi %s138, %s138
                  %s223 = sphi %s134, %s134
                $region54: #{special_block_forward.1} parent=50 // loop_header_branch
                  %220 = sbr.rel (%p218) target = $region58
                $region55: #{special_block_forward.1} parent=50 // loop_body
                  %v224 = vld [vmem:[%s222] sm:$0xff]
                  %225 = vst [vmem:[%s223] sm:$0xff] %v224
                  %v226 = vld [vmem:[%s222 + $0x8] sm:$0xff]
                  %227 = vst [vmem:[%s223 + $0x8] sm:$0xff] %v226
                  %v228 = vld [vmem:[%s222 + $0x10] sm:$0xff]
                  %229 = vst [vmem:[%s223 + $0x10] sm:$0xff] %v228
                  %v230 = vld [vmem:[%s222 + $0x18] sm:$0xff]
                  %231 = vst [vmem:[%s223 + $0x18] sm:$0xff] %v230
                  %v232 = vld [vmem:[%s222 + $0x20] sm:$0xff]
                  %233 = vst [vmem:[%s223 + $0x20] sm:$0xff] %v232
                  %v234 = vld [vmem:[%s222 + $0x28] sm:$0xff]
                  %235 = vst [vmem:[%s223 + $0x28] sm:$0xff] %v234
                  %v236 = vld [vmem:[%s222 + $0x90] sm:$0xff]
                  %237 = vst [vmem:[%s223 + $0x30] sm:$0xff] %v236
                  %v238 = vld [vmem:[%s222 + $0x98] sm:$0xff]
                  %239 = vst [vmem:[%s223 + $0x38] sm:$0xff] %v238
                  %v240 = vld [vmem:[%s222 + $0xa0] sm:$0xff]
                  %241 = vst [vmem:[%s223 + $0x40] sm:$0xff] %v240
                  %v242 = vld [vmem:[%s222 + $0xa8] sm:$0xff]
                  %243 = vst [vmem:[%s223 + $0x48] sm:$0xff] %v242
                  %v244 = vld [vmem:[%s222 + $0xb0] sm:$0xff]
                  %245 = vst [vmem:[%s223 + $0x50] sm:$0xff] %v244
                  %v246 = vld [vmem:[%s222 + $0xb8] sm:$0xff]
                  %247 = vst [vmem:[%s223 + $0x58] sm:$0xff] %v246
                  %v248 = vld [vmem:[%s222 + $0x120] sm:$0xff]
                  %249 = vst [vmem:[%s223 + $0x60] sm:$0xff] %v248
                  %v250 = vld [vmem:[%s222 + $0x128] sm:$0xff]
                  %251 = vst [vmem:[%s223 + $0x68] sm:$0xff] %v250
                  %v252 = vld [vmem:[%s222 + $0x130] sm:$0xff]
                  %253 = vst [vmem:[%s223 + $0x70] sm:$0xff] %v252
                  %v254 = vld [vmem:[%s222 + $0x138] sm:$0xff]
                  %255 = vst [vmem:[%s223 + $0x78] sm:$0xff] %v254
                  %v256 = vld [vmem:[%s222 + $0x140] sm:$0xff]
                  %257 = vst [vmem:[%s223 + $0x80] sm:$0xff] %v256
                  %v258 = vld [vmem:[%s222 + $0x148] sm:$0xff]
                  %259 = vst [vmem:[%s223 + $0x88] sm:$0xff] %v258
                  %v260 = vld [vmem:[%s222 + $0x1b0] sm:$0xff]
                  %261 = vst [vmem:[%s223 + $0x90] sm:$0xff] %v260
                  %v262 = vld [vmem:[%s222 + $0x1b8] sm:$0xff]
                  %263 = vst [vmem:[%s223 + $0x98] sm:$0xff] %v262
                  %v264 = vld [vmem:[%s222 + $0x1c0] sm:$0xff]
                  %265 = vst [vmem:[%s223 + $0xa0] sm:$0xff] %v264
                  %v266 = vld [vmem:[%s222 + $0x1c8] sm:$0xff]
                  %267 = vst [vmem:[%s223 + $0xa8] sm:$0xff] %v266
                  %v268 = vld [vmem:[%s222 + $0x1d0] sm:$0xff]
                  %269 = vst [vmem:[%s223 + $0xb0] sm:$0xff] %v268
                  %v270 = vld [vmem:[%s222 + $0x1d8] sm:$0xff]
                  %271 = vst [vmem:[%s223 + $0xb8] sm:$0xff] %v270
                  %v272 = vld [vmem:[%s222 + $0x240] sm:$0xff]
                  %273 = vst [vmem:[%s223 + $0xc0] sm:$0xff] %v272
                  %v274 = vld [vmem:[%s222 + $0x248] sm:$0xff]
                  %275 = vst [vmem:[%s223 + $0xc8] sm:$0xff] %v274
                  %v276 = vld [vmem:[%s222 + $0x250] sm:$0xff]
                  %277 = vst [vmem:[%s223 + $0xd0] sm:$0xff] %v276
                  %v278 = vld [vmem:[%s222 + $0x258] sm:$0xff]
                  %279 = vst [vmem:[%s223 + $0xd8] sm:$0xff] %v278
                  %v280 = vld [vmem:[%s222 + $0x260] sm:$0xff]
                  %281 = vst [vmem:[%s223 + $0xe0] sm:$0xff] %v280
                  %v282 = vld [vmem:[%s222 + $0x268] sm:$0xff]
                  %283 = vst [vmem:[%s223 + $0xe8] sm:$0xff] %v282
                $region56: #{special_block_forward.1} parent=50 // loop_footer
                  %s221 = sadd.s32 1, %s217
                $region57: #{special_block_forward.1} parent=50 // loop_footer_branch
                  %216 = sbr.rel target = $region53
                $region58: #{special_block_forward.1} parent=50 // loop_exit
                  _
              $region51: #{special_block_forward.1} parent=35 // pred_fallthru
                _
              // Predicated region
              $region59: #{special_block_forward.1} parent=35 // pred_check
                _
              $region60: #{special_block_forward.1} parent=35 // pred_check_branch
                %285 = sbr.rel target = $region62
              $region61: #{special_block_forward.1} parent=35 // pred_region
                _
              $region62: #{special_block_forward.1} parent=35 // pred_fallthru
                _
            $region36: #{special_block_forward.1} parent=31 // pred_fallthru
              _
            // Predicated region
            $region37: #{special_block_forward.1} parent=31 // pred_check
              _
            $region38: #{special_block_forward.1} parent=31 // pred_check_branch
              %144 = sbr.rel target = $region40
            $region39: #{special_block_forward.1} parent=31 // pred_region
              loop: start=0, step=1, limit=1
              $region41: #{special_block_forward.1} parent=39 // loop_pre_header
                _
              $region42: #{special_block_forward.1} parent=39 // loop_header
                %s147 = sphi 0, %s151
                %p148 = scmp.ge.s32.totalorder %s147, 1
                %s152 = sphi %s138, %s138
                %s153 = sphi %s134, %s134
              $region43: #{special_block_forward.1} parent=39 // loop_header_branch
                %150 = sbr.rel (%p148) target = $region47
              $region44: #{special_block_forward.1} parent=39 // loop_body
                %v154 = vld [vmem:[%s152] sm:$0xff]
                %155 = vst [vmem:[%s153] sm:$0xff] %v154
                %v156 = vld [vmem:[%s152 + $0x8] sm:$0xff]
                %157 = vst [vmem:[%s153 + $0x8] sm:$0xff] %v156
                %v158 = vld [vmem:[%s152 + $0x10] sm:$0xff]
                %159 = vst [vmem:[%s153 + $0x10] sm:$0xff] %v158
                %v160 = vld [vmem:[%s152 + $0x18] sm:$0xff]
                %161 = vst [vmem:[%s153 + $0x18] sm:$0xff] %v160
                %v162 = vld [vmem:[%s152 + $0x20] sm:$0xff]
                %163 = vst [vmem:[%s153 + $0x20] sm:$0xff] %v162
                %v164 = vld [vmem:[%s152 + $0x28] sm:$0xff]
                %165 = vst [vmem:[%s153 + $0x28] sm:$0xff] %v164
                %v166 = vld [vmem:[%s152 + $0x90] sm:$0xff]
                %167 = vst [vmem:[%s153 + $0x30] sm:$0xff] %v166
                %v168 = vld [vmem:[%s152 + $0x98] sm:$0xff]
                %169 = vst [vmem:[%s153 + $0x38] sm:$0xff] %v168
                %v170 = vld [vmem:[%s152 + $0xa0] sm:$0xff]
                %171 = vst [vmem:[%s153 + $0x40] sm:$0xff] %v170
                %v172 = vld [vmem:[%s152 + $0xa8] sm:$0xff]
                %173 = vst [vmem:[%s153 + $0x48] sm:$0xff] %v172
                %v174 = vld [vmem:[%s152 + $0xb0] sm:$0xff]
                %175 = vst [vmem:[%s153 + $0x50] sm:$0xff] %v174
                %v176 = vld [vmem:[%s152 + $0xb8] sm:$0xff]
                %177 = vst [vmem:[%s153 + $0x58] sm:$0xff] %v176
                %v178 = vld [vmem:[%s152 + $0x120] sm:$0xff]
                %179 = vst [vmem:[%s153 + $0x60] sm:$0xff] %v178
                %v180 = vld [vmem:[%s152 + $0x128] sm:$0xff]
                %181 = vst [vmem:[%s153 + $0x68] sm:$0xff] %v180
                %v182 = vld [vmem:[%s152 + $0x130] sm:$0xff]
                %183 = vst [vmem:[%s153 + $0x70] sm:$0xff] %v182
                %v184 = vld [vmem:[%s152 + $0x138] sm:$0xff]
                %185 = vst [vmem:[%s153 + $0x78] sm:$0xff] %v184
                %v186 = vld [vmem:[%s152 + $0x140] sm:$0xff]
                %187 = vst [vmem:[%s153 + $0x80] sm:$0xff] %v186
                %v188 = vld [vmem:[%s152 + $0x148] sm:$0xff]
                %189 = vst [vmem:[%s153 + $0x88] sm:$0xff] %v188
                %v190 = vld [vmem:[%s152 + $0x1b0] sm:$0xff]
                %191 = vst [vmem:[%s153 + $0x90] sm:$0xff] %v190
                %v192 = vld [vmem:[%s152 + $0x1b8] sm:$0xff]
                %193 = vst [vmem:[%s153 + $0x98] sm:$0xff] %v192
                %v194 = vld [vmem:[%s152 + $0x1c0] sm:$0xff]
                %195 = vst [vmem:[%s153 + $0xa0] sm:$0xff] %v194
                %v196 = vld [vmem:[%s152 + $0x1c8] sm:$0xff]
                %197 = vst [vmem:[%s153 + $0xa8] sm:$0xff] %v196
                %v198 = vld [vmem:[%s152 + $0x1d0] sm:$0xff]
                %199 = vst [vmem:[%s153 + $0xb0] sm:$0xff] %v198
                %v200 = vld [vmem:[%s152 + $0x1d8] sm:$0xff]
                %201 = vst [vmem:[%s153 + $0xb8] sm:$0xff] %v200
                %v202 = vld [vmem:[%s152 + $0x240] sm:$0xff]
                %203 = vst [vmem:[%s153 + $0xc0] sm:$0xff] %v202
                %v204 = vld [vmem:[%s152 + $0x248] sm:$0xff]
                %205 = vst [vmem:[%s153 + $0xc8] sm:$0xff] %v204
                %v206 = vld [vmem:[%s152 + $0x250] sm:$0xff]
                %207 = vst [vmem:[%s153 + $0xd0] sm:$0xff] %v206
                %v208 = vld [vmem:[%s152 + $0x258] sm:$0xff]
                %209 = vst [vmem:[%s153 + $0xd8] sm:$0xff] %v208
                %v210 = vld [vmem:[%s152 + $0x260] sm:$0xff]
                %211 = vst [vmem:[%s153 + $0xe0] sm:$0xff] %v210
                %v212 = vld [vmem:[%s152 + $0x268] sm:$0xff]
                %213 = vst [vmem:[%s153 + $0xe8] sm:$0xff] %v212
              $region45: #{special_block_forward.1} parent=39 // loop_footer
                %s151 = sadd.s32 1, %s147
              $region46: #{special_block_forward.1} parent=39 // loop_footer_branch
                %146 = sbr.rel target = $region42
              $region47: #{special_block_forward.1} parent=39 // loop_exit
                _
            $region40: #{special_block_forward.1} parent=31 // pred_fallthru
              _
          $region32: #{special_block_forward.1} parent=27 // pred_fallthru
            _
          %286 = vnop
        $region28: #{special_block_forward.1} parent=23 // pred_fallthru
          _
      $region24: #{special_block_forward.1} parent=5 // pred_fallthru
        _
      %p287 = scmp.le.s32.totalorder 1, %s9
      %p288 = scmp.lt.s32.totalorder %s9, 4
      %p289 = pnand %p287, %p288
      %p290 = pneg %p289
      // Predicated region
      $region63: #{special_block_forward.1} parent=5 // pred_check
        _
      $region64: #{special_block_forward.1} parent=5 // pred_check_branch
        %292 = sbr.rel (%p289) target = $region66
      $region65: #{special_block_forward.1} parent=5 // pred_region
        %s293 = ssub.s32 %s9, 1
        %s294 = sand.u32 %s22, 1
        %s295 = sand.u32 %s22, 1
        %s296 = smul.addr %s295, 240
        %s297 = scalar_lea.vmem [#allocation2], %s296
        // Predicated region
        $region67: #{special_block_forward.1} parent=65 // pred_check
          %p298 = pneg %p35
        $region68: #{special_block_forward.1} parent=65 // pred_check_branch
          %300 = sbr.rel (%p298) target = $region70
        $region69: #{special_block_forward.1} parent=65 // pred_region
          _
        $region70: #{special_block_forward.1} parent=65 // pred_fallthru
          _
        %s301 = sand.u32 %s22, 1
        %s302 = sand.u32 %s22, 1
        %s303 = smul.addr %s302, 240
        %s304 = scalar_lea.vmem [#allocation2], %s303
        %p305 = pneg %p35
        %p306 = pneg %p32
        %p307 = pneg %p56
        %p308 = pneg %p53
        %p309 = pneg %p77
        %p310 = pneg %p74
        %p311 = pneg %p103
        %p312 = pneg %p100
        %s313 = smul.u32 6, %s14
        %p314 = scmp.lt.s32.totalorder %s313, 17
        %s315 = scalar_select %p314, %s313, 17
        %s316 = smul.addr %s315, 2
        %s317 = smul.addr %s316, 4
        %s318 = scalar_lea.vmem %s3, %s317
        %s319 = smul.u32 6, %s14
        %s320 = smul.u32 6, %s14
        %p321 = scmp.lt.s32.totalorder %s320, 17
        %s322 = scalar_select %p321, %s320, 17
        %s323 = smul.addr %s322, 2
        %s324 = smul.addr %s323, 4
        %s325 = scalar_lea.vmem %s3, %s324
        %s326 = smul.u32 6, %s14
        %v328 = vld [vmem:[%s1] sm:$0xff]
        %v329 = vld [vmem:[%s1 + $0x8] sm:$0xff]
        %v330 = vld [vmem:[%s1 + $0x10] sm:$0xff]
        %v331 = vld [vmem:[%s1 + $0x18] sm:$0xff]
        %v332 = vld [vmem:[%s1 + $0x20] sm:$0xff]
        %v333 = vld [vmem:[%s1 + $0x28] sm:$0xff]
        %v334 = vld [vmem:[%s1 + $0x30] sm:$0xff]
        %v335 = vld [vmem:[%s1 + $0x38] sm:$0xff]
        %v336 = vld [vmem:[%s1 + $0x40] sm:$0xff]
        %v337 = vld [vmem:[%s1 + $0x48] sm:$0xff]
        %v338 = vld [vmem:[%s1 + $0x50] sm:$0xff]
        %v339 = vld [vmem:[%s1 + $0x58] sm:$0xff]
        %v340 = vld [vmem:[%s1 + $0x60] sm:$0xff]
        %v341 = vld [vmem:[%s1 + $0x68] sm:$0xff]
        %v342 = vld [vmem:[%s1 + $0x70] sm:$0xff]
        %v343 = vld [vmem:[%s1 + $0x78] sm:$0xff]
        %v344 = vld [vmem:[%s1 + $0x80] sm:$0xff]
        %v345 = vld [vmem:[%s1 + $0x88] sm:$0xff]
        %v346 = vld [vmem:[%s1 + $0x90] sm:$0xff]
        %v347 = vld [vmem:[%s1 + $0x98] sm:$0xff]
        %v348 = vld [vmem:[%s297] sm:$0xff]
        %v349 = vld [vmem:[%s297 + $0x8] sm:$0xff]
        %v350 = vld [vmem:[%s297 + $0x10] sm:$0xff]
        %v351 = vld [vmem:[%s297 + $0x18] sm:$0xff]
        %v352 = vld [vmem:[%s297 + $0x20] sm:$0xff]
        %v353 = vld [vmem:[%s297 + $0x28] sm:$0xff]
        %v360 = vunpack.c.l.b16 %v348
        %v361 = vunpack.c.h.b16 %v348
        %v362 = vunpack.c.l.b16 %v349
        %v363 = vunpack.c.h.b16 %v349
        %v364 = vunpack.c.l.b16 %v350
        %v365 = vunpack.c.h.b16 %v350
        %v366 = vunpack.c.l.b16 %v351
        %v367 = vunpack.c.h.b16 %v351
        %v368 = vunpack.c.l.b16 %v352
        %v369 = vunpack.c.h.b16 %v352
        %v370 = vunpack.c.l.b16 %v353
        %v371 = vunpack.c.h.b16 %v353
        %v372 = vpack.c.b16 %v362, %v360
        %v373 = vpack.c.b16 %v363, %v361
        %v374 = vpack.c.b16 %v366, %v364
        %v375 = vpack.c.b16 %v367, %v365
        %v376 = vpack.c.b16 %v370, %v368
        %v377 = vpack.c.b16 %v371, %v369
        %v401 = vunpack.c.l.b16 %v328
        %v402 = vunpack.c.h.b16 %v328
        %v403 = vunpack.c.l.b16 %v329
        %v404 = vunpack.c.h.b16 %v329
        %v405 = vunpack.c.l.b16 %v330
        %v406 = vunpack.c.h.b16 %v330
        %v407 = vunpack.c.l.b16 %v331
        %v408 = vunpack.c.h.b16 %v331
        %v409 = vunpack.c.l.b16 %v332
        %v410 = vunpack.c.h.b16 %v332
        %v411 = vunpack.c.l.b16 %v333
        %v412 = vunpack.c.h.b16 %v333
        %v413 = vunpack.c.l.b16 %v334
        %v414 = vunpack.c.h.b16 %v334
        %v415 = vunpack.c.l.b16 %v335
        %v416 = vunpack.c.h.b16 %v335
        %v417 = vunpack.c.l.b16 %v336
        %v418 = vunpack.c.h.b16 %v336
        %v419 = vunpack.c.l.b16 %v337
        %v420 = vunpack.c.h.b16 %v337
        %v421 = vunpack.c.l.b16 %v338
        %v422 = vunpack.c.h.b16 %v338
        %v423 = vunpack.c.l.b16 %v339
        %v424 = vunpack.c.h.b16 %v339
        %v425 = vunpack.c.l.b16 %v340
        %v426 = vunpack.c.h.b16 %v340
        %v427 = vunpack.c.l.b16 %v341
        %v428 = vunpack.c.h.b16 %v341
        %v429 = vunpack.c.l.b16 %v342
        %v430 = vunpack.c.h.b16 %v342
        %v431 = vunpack.c.l.b16 %v343
        %v432 = vunpack.c.h.b16 %v343
        %v433 = vunpack.c.l.b16 %v344
        %v434 = vunpack.c.h.b16 %v344
        %v435 = vunpack.c.l.b16 %v345
        %v436 = vunpack.c.h.b16 %v345
        %v437 = vunpack.c.l.b16 %v346
        %v438 = vunpack.c.h.b16 %v346
        %v439 = vunpack.c.l.b16 %v347
        %v440 = vunpack.c.h.b16 %v347
        %v441 = vpack.c.b16 %v403, %v401
        %v442 = vpack.c.b16 %v404, %v402
        %v443 = vpack.c.b16 %v407, %v405
        %v444 = vpack.c.b16 %v408, %v406
        %v445 = vpack.c.b16 %v411, %v409
        %v446 = vpack.c.b16 %v412, %v410
        %v447 = vpack.c.b16 %v415, %v413
        %v448 = vpack.c.b16 %v416, %v414
        %v449 = vpack.c.b16 %v419, %v417
        %v450 = vpack.c.b16 %v420, %v418
        %v451 = vpack.c.b16 %v423, %v421
        %v452 = vpack.c.b16 %v424, %v422
        %v453 = vpack.c.b16 %v427, %v425
        %v454 = vpack.c.b16 %v428, %v426
        %v455 = vpack.c.b16 %v431, %v429
        %v456 = vpack.c.b16 %v432, %v430
        %v457 = vpack.c.b16 %v435, %v433
        %v458 = vpack.c.b16 %v436, %v434
        %v459 = vpack.c.b16 %v439, %v437
        %v460 = vpack.c.b16 %v440, %v438
        %vm481 = vcmask 261120
        %v483 = vsel %vm481, %v373, 0
        %v486 = vsel %vm481, %v375, 0
        %v489 = vsel %vm481, %v377, 0
        %491 = vmatprep.subr.bf16.mxu0 %v442
        %492 = vmatpush1.bf16.msra.mxu0 %v441
        %493 = vmatprep.subr.bf16.mxu0 %v444
        %494 = vmatpush1.bf16.msra.mxu0 %v443
        %495 = vmatprep.subr.bf16.mxu0 %v446
        %496 = vmatpush1.bf16.msra.mxu0 %v445
        %497 = vmatprep.subr.bf16.mxu0 %v448
        %498 = vmatpush1.bf16.msra.mxu0 %v447
        %499 = vmatprep.subr.bf16.mxu0 %v450
        %500 = vmatpush1.bf16.msra.mxu0 %v449
        %501 = vmatprep.subr.bf16.mxu0 %v452
        %502 = vmatpush1.bf16.msra.mxu0 %v451
        %503 = vmatprep.subr.bf16.mxu0 %v454
        %504 = vmatpush1.bf16.msra.mxu0 %v453
        %505 = vmatprep.subr.bf16.mxu0 %v456
        %506 = vmatpush1.bf16.msra.mxu0 %v455
        %507 = vmatprep.subr.bf16.mxu0 %v458
        %508 = vmatpush1.bf16.msra.mxu0 %v457
        %509 = vmatprep.subr.bf16.mxu0 %v460
        %510 = vmatpush1.bf16.msra.mxu0 %v459
        %511 = vmatprep.subr.bf16.mxu0 0
        %512 = vmatpush1.bf16.msra.mxu0 0
        %513 = vmatprep.subr.bf16.mxu0 0
        %514 = vmatpush1.bf16.msra.mxu0 0
        %515 = vmatprep.subr.bf16.mxu0 0
        %516 = vmatpush1.bf16.msra.mxu0 0
        %517 = vmatprep.subr.bf16.mxu0 0
        %518 = vmatpush1.bf16.msra.mxu0 0
        %519 = vmatprep.subr.bf16.mxu0 0
        %520 = vmatpush1.bf16.msra.mxu0 0
        %521 = vmatprep.subr.bf16.mxu0 0
        %522 = vmatpush1.bf16.msra.mxu0 0
        %523 = vmatprep.mubr.bf16.mxu0 %v483
        %524 = vmatmul.mubr.bf16.gmra.mrb[0].mxu0 %v372
        %v525 = vpop.f32.mrb[0].mxu0
        %v526 = vadd.f32 0.0, %v525
        %v527 = vpop.f32.mrb[0].mxu0
        %v528 = vadd.f32 0.0, %v527
        %v529 = vpop.f32.mrb[0].mxu0
        %v530 = vadd.f32 0.0, %v529
        %v531 = vpop.f32.mrb[0].mxu0
        %v532 = vadd.f32 0.0, %v531
        %533 = vmatprep.mubr.bf16.mxu0 %v486
        %534 = vmatmul.mubr.bf16.gmra.mrb[0].mxu0 %v374
        %v535 = vpop.f32.mrb[0].mxu0
        %v536 = vadd.f32 0.0, %v535
        %v537 = vpop.f32.mrb[0].mxu0
        %v538 = vadd.f32 0.0, %v537
        %v539 = vpop.f32.mrb[0].mxu0
        %v540 = vadd.f32 0.0, %v539
        %v541 = vpop.f32.mrb[0].mxu0
        %v542 = vadd.f32 0.0, %v541
        %543 = vmatprep.mubr.bf16.mxu0 %v489
        %544 = vmatmul.mubr.bf16.gmra.mrb[0].mxu0 %v376
        %v545 = vpop.f32.mrb[0].mxu0
        %v546 = vadd.f32 0.0, %v545
        %v547 = vpop.f32.mrb[0].mxu0
        %v548 = vadd.f32 0.0, %v547
        %v549 = vpop.f32.mrb[0].mxu0
        %v550 = vadd.f32 0.0, %v549
        %v551 = vpop.f32.mrb[0].mxu0
        %v552 = vadd.f32 0.0, %v551
        %553 = vdwg.mxu0
        %s554 = scalar_lea.vmem %s297, 48 [#allocation2]
        %v555 = vld [vmem:[%s554] sm:$0xff]
        %v556 = vld [vmem:[%s554 + $0x8] sm:$0xff]
        %v557 = vld [vmem:[%s554 + $0x10] sm:$0xff]
        %v558 = vld [vmem:[%s554 + $0x18] sm:$0xff]
        %v559 = vld [vmem:[%s554 + $0x20] sm:$0xff]
        %v560 = vld [vmem:[%s554 + $0x28] sm:$0xff]
        %v567 = vunpack.c.l.b16 %v555
        %v568 = vunpack.c.h.b16 %v555
        %v569 = vunpack.c.l.b16 %v556
        %v570 = vunpack.c.h.b16 %v556
        %v571 = vunpack.c.l.b16 %v557
        %v572 = vunpack.c.h.b16 %v557
        %v573 = vunpack.c.l.b16 %v558
        %v574 = vunpack.c.h.b16 %v558
        %v575 = vunpack.c.l.b16 %v559
        %v576 = vunpack.c.h.b16 %v559
        %v577 = vunpack.c.l.b16 %v560
        %v578 = vunpack.c.h.b16 %v560
        %v579 = vpack.c.b16 %v569, %v567
        %v580 = vpack.c.b16 %v570, %v568
        %v581 = vpack.c.b16 %v573, %v571
        %v582 = vpack.c.b16 %v574, %v572
        %v583 = vpack.c.b16 %v577, %v575
        %v584 = vpack.c.b16 %v578, %v576
        %v589 = vsel %vm481, %v580, 0
        %v592 = vsel %vm481, %v582, 0
        %v595 = vsel %vm481, %v584, 0
        %597 = vmatprep.subr.bf16.mxu0 %v442
        %598 = vmatpush1.bf16.msra.mxu0 %v441
        %599 = vmatprep.subr.bf16.mxu0 %v444
        %600 = vmatpush1.bf16.msra.mxu0 %v443
        %601 = vmatprep.subr.bf16.mxu0 %v446
        %602 = vmatpush1.bf16.msra.mxu0 %v445
        %603 = vmatprep.subr.bf16.mxu0 %v448
        %604 = vmatpush1.bf16.msra.mxu0 %v447
        %605 = vmatprep.subr.bf16.mxu0 %v450
        %606 = vmatpush1.bf16.msra.mxu0 %v449
        %607 = vmatprep.subr.bf16.mxu0 %v452
        %608 = vmatpush1.bf16.msra.mxu0 %v451
        %609 = vmatprep.subr.bf16.mxu0 %v454
        %610 = vmatpush1.bf16.msra.mxu0 %v453
        %611 = vmatprep.subr.bf16.mxu0 %v456
        %612 = vmatpush1.bf16.msra.mxu0 %v455
        %613 = vmatprep.subr.bf16.mxu0 %v458
        %614 = vmatpush1.bf16.msra.mxu0 %v457
        %615 = vmatprep.subr.bf16.mxu0 %v460
        %616 = vmatpush1.bf16.msra.mxu0 %v459
        %617 = vmatprep.subr.bf16.mxu0 0
        %618 = vmatpush1.bf16.msra.mxu0 0
        %619 = vmatprep.subr.bf16.mxu0 0
        %620 = vmatpush1.bf16.msra.mxu0 0
        %621 = vmatprep.subr.bf16.mxu0 0
        %622 = vmatpush1.bf16.msra.mxu0 0
        %623 = vmatprep.subr.bf16.mxu0 0
        %624 = vmatpush1.bf16.msra.mxu0 0
        %625 = vmatprep.subr.bf16.mxu0 0
        %626 = vmatpush1.bf16.msra.mxu0 0
        %627 = vmatprep.subr.bf16.mxu0 0
        %628 = vmatpush1.bf16.msra.mxu0 0
        %629 = vmatprep.mubr.bf16.mxu0 %v589
        %630 = vmatmul.mubr.bf16.gmra.mrb[0].mxu0 %v579
        %v631 = vpop.f32.mrb[0].mxu0
        %v632 = vadd.f32 0.0, %v631
        %v633 = vpop.f32.mrb[0].mxu0
        %v634 = vadd.f32 0.0, %v633
        %v635 = vpop.f32.mrb[0].mxu0
        %v636 = vadd.f32 0.0, %v635
        %v637 = vpop.f32.mrb[0].mxu0
        %v638 = vadd.f32 0.0, %v637
        %639 = vmatprep.mubr.bf16.mxu0 %v592
        %640 = vmatmul.mubr.bf16.gmra.mrb[0].mxu0 %v581
        %v641 = vpop.f32.mrb[0].mxu0
        %v642 = vadd.f32 0.0, %v641
        %v643 = vpop.f32.mrb[0].mxu0
        %v644 = vadd.f32 0.0, %v643
        %v645 = vpop.f32.mrb[0].mxu0
        %v646 = vadd.f32 0.0, %v645
        %v647 = vpop.f32.mrb[0].mxu0
        %v648 = vadd.f32 0.0, %v647
        %649 = vmatprep.mubr.bf16.mxu0 %v595
        %650 = vmatmul.mubr.bf16.gmra.mrb[0].mxu0 %v583
        %v651 = vpop.f32.mrb[0].mxu0
        %v652 = vadd.f32 0.0, %v651
        %v653 = vpop.f32.mrb[0].mxu0
        %v654 = vadd.f32 0.0, %v653
        %v655 = vpop.f32.mrb[0].mxu0
        %v656 = vadd.f32 0.0, %v655
        %v657 = vpop.f32.mrb[0].mxu0
        %v658 = vadd.f32 0.0, %v657
        %659 = vdwg.mxu0
        %v660 = vmax.f32 %v526, %v632
        %v661 = vmax.f32 %v528, %v634
        %v662 = vmax.f32 %v530, %v636
        %v663 = vmax.f32 %v532, %v638
        %v664 = vmax.f32 %v536, %v642
        %v665 = vmax.f32 %v538, %v644
        %v666 = vmax.f32 %v540, %v646
        %v667 = vmax.f32 %v542, %v648
        %v668 = vmax.f32 %v546, %v652
        %v669 = vmax.f32 %v548, %v654
        %v670 = vmax.f32 %v550, %v656
        %v671 = vmax.f32 %v552, %v658
        %s672 = scalar_lea.vmem %s297, 96 [#allocation2]
        %v673 = vld [vmem:[%s672] sm:$0xff]
        %v674 = vld [vmem:[%s672 + $0x8] sm:$0xff]
        %v675 = vld [vmem:[%s672 + $0x10] sm:$0xff]
        %v676 = vld [vmem:[%s672 + $0x18] sm:$0xff]
        %v677 = vld [vmem:[%s672 + $0x20] sm:$0xff]
        %v678 = vld [vmem:[%s672 + $0x28] sm:$0xff]
        %v685 = vunpack.c.l.b16 %v673
        %v686 = vunpack.c.h.b16 %v673
        %v687 = vunpack.c.l.b16 %v674
        %v688 = vunpack.c.h.b16 %v674
        %v689 = vunpack.c.l.b16 %v675
        %v690 = vunpack.c.h.b16 %v675
        %v691 = vunpack.c.l.b16 %v676
        %v692 = vunpack.c.h.b16 %v676
        %v693 = vunpack.c.l.b16 %v677
        %v694 = vunpack.c.h.b16 %v677
        %v695 = vunpack.c.l.b16 %v678
        %v696 = vunpack.c.h.b16 %v678
        %v697 = vpack.c.b16 %v687, %v685
        %v698 = vpack.c.b16 %v688, %v686
        %v699 = vpack.c.b16 %v691, %v689
        %v700 = vpack.c.b16 %v692, %v690
        %v701 = vpack.c.b16 %v695, %v693
        %v702 = vpack.c.b16 %v696, %v694
        %v707 = vsel %vm481, %v698, 0
        %v710 = vsel %vm481, %v700, 0
        %v713 = vsel %vm481, %v702, 0
        %715 = vmatprep.subr.bf16.mxu0 %v442
        %716 = vmatpush1.bf16.msra.mxu0 %v441
        %717 = vmatprep.subr.bf16.mxu0 %v444
        %718 = vmatpush1.bf16.msra.mxu0 %v443
        %719 = vmatprep.subr.bf16.mxu0 %v446
        %720 = vmatpush1.bf16.msra.mxu0 %v445
        %721 = vmatprep.subr.bf16.mxu0 %v448
        %722 = vmatpush1.bf16.msra.mxu0 %v447
        %723 = vmatprep.subr.bf16.mxu0 %v450
        %724 = vmatpush1.bf16.msra.mxu0 %v449
        %725 = vmatprep.subr.bf16.mxu0 %v452
        %726 = vmatpush1.bf16.msra.mxu0 %v451
        %727 = vmatprep.subr.bf16.mxu0 %v454
        %728 = vmatpush1.bf16.msra.mxu0 %v453
        %729 = vmatprep.subr.bf16.mxu0 %v456
        %730 = vmatpush1.bf16.msra.mxu0 %v455
        %731 = vmatprep.subr.bf16.mxu0 %v458
        %732 = vmatpush1.bf16.msra.mxu0 %v457
        %733 = vmatprep.subr.bf16.mxu0 %v460
        %734 = vmatpush1.bf16.msra.mxu0 %v459
        %735 = vmatprep.subr.bf16.mxu0 0
        %736 = vmatpush1.bf16.msra.mxu0 0
        %737 = vmatprep.subr.bf16.mxu0 0
        %738 = vmatpush1.bf16.msra.mxu0 0
        %739 = vmatprep.subr.bf16.mxu0 0
        %740 = vmatpush1.bf16.msra.mxu0 0
        %741 = vmatprep.subr.bf16.mxu0 0
        %742 = vmatpush1.bf16.msra.mxu0 0
        %743 = vmatprep.subr.bf16.mxu0 0
        %744 = vmatpush1.bf16.msra.mxu0 0
        %745 = vmatprep.subr.bf16.mxu0 0
        %746 = vmatpush1.bf16.msra.mxu0 0
        %747 = vmatprep.mubr.bf16.mxu0 %v707
        %748 = vmatmul.mubr.bf16.gmra.mrb[0].mxu0 %v697
        %v749 = vpop.f32.mrb[0].mxu0
        %v750 = vadd.f32 0.0, %v749
        %v751 = vpop.f32.mrb[0].mxu0
        %v752 = vadd.f32 0.0, %v751
        %v753 = vpop.f32.mrb[0].mxu0
        %v754 = vadd.f32 0.0, %v753
        %v755 = vpop.f32.mrb[0].mxu0
        %v756 = vadd.f32 0.0, %v755
        %757 = vmatprep.mubr.bf16.mxu0 %v710
        %758 = vmatmul.mubr.bf16.gmra.mrb[0].mxu0 %v699
        %v759 = vpop.f32.mrb[0].mxu0
        %v760 = vadd.f32 0.0, %v759
        %v761 = vpop.f32.mrb[0].mxu0
        %v762 = vadd.f32 0.0, %v761
        %v763 = vpop.f32.mrb[0].mxu0
        %v764 = vadd.f32 0.0, %v763
        %v765 = vpop.f32.mrb[0].mxu0
        %v766 = vadd.f32 0.0, %v765
        %767 = vmatprep.mubr.bf16.mxu0 %v713
        %768 = vmatmul.mubr.bf16.gmra.mrb[0].mxu0 %v701
        %v769 = vpop.f32.mrb[0].mxu0
        %v770 = vadd.f32 0.0, %v769
        %v771 = vpop.f32.mrb[0].mxu0
        %v772 = vadd.f32 0.0, %v771
        %v773 = vpop.f32.mrb[0].mxu0
        %v774 = vadd.f32 0.0, %v773
        %v775 = vpop.f32.mrb[0].mxu0
        %v776 = vadd.f32 0.0, %v775
        %777 = vdwg.mxu0
        %v778 = vmax.f32 %v660, %v750
        %v779 = vmax.f32 %v661, %v752
        %v780 = vmax.f32 %v662, %v754
        %v781 = vmax.f32 %v663, %v756
        %v782 = vmax.f32 %v664, %v760
        %v783 = vmax.f32 %v665, %v762
        %v784 = vmax.f32 %v666, %v764
        %v785 = vmax.f32 %v667, %v766
        %v786 = vmax.f32 %v668, %v770
        %v787 = vmax.f32 %v669, %v772
        %v788 = vmax.f32 %v670, %v774
        %v789 = vmax.f32 %v671, %v776
        %s790 = scalar_lea.vmem %s297, 144 [#allocation2]
        %v791 = vld [vmem:[%s790] sm:$0xff]
        %v792 = vld [vmem:[%s790 + $0x8] sm:$0xff]
        %v793 = vld [vmem:[%s790 + $0x10] sm:$0xff]
        %v794 = vld [vmem:[%s790 + $0x18] sm:$0xff]
        %v795 = vld [vmem:[%s790 + $0x20] sm:$0xff]
        %v796 = vld [vmem:[%s790 + $0x28] sm:$0xff]
        %v803 = vunpack.c.l.b16 %v791
        %v804 = vunpack.c.h.b16 %v791
        %v805 = vunpack.c.l.b16 %v792
        %v806 = vunpack.c.h.b16 %v792
        %v807 = vunpack.c.l.b16 %v793
        %v808 = vunpack.c.h.b16 %v793
        %v809 = vunpack.c.l.b16 %v794
        %v810 = vunpack.c.h.b16 %v794
        %v811 = vunpack.c.l.b16 %v795
        %v812 = vunpack.c.h.b16 %v795
        %v813 = vunpack.c.l.b16 %v796
        %v814 = vunpack.c.h.b16 %v796
        %v815 = vpack.c.b16 %v805, %v803
        %v816 = vpack.c.b16 %v806, %v804
        %v817 = vpack.c.b16 %v809, %v807
        %v818 = vpack.c.b16 %v810, %v808
        %v819 = vpack.c.b16 %v813, %v811
        %v820 = vpack.c.b16 %v814, %v812
        %v825 = vsel %vm481, %v816, 0
        %v828 = vsel %vm481, %v818, 0
        %v831 = vsel %vm481, %v820, 0
        %833 = vmatprep.subr.bf16.mxu0 %v442
        %834 = vmatpush1.bf16.msra.mxu0 %v441
        %835 = vmatprep.subr.bf16.mxu0 %v444
        %836 = vmatpush1.bf16.msra.mxu0 %v443
        %837 = vmatprep.subr.bf16.mxu0 %v446
        %838 = vmatpush1.bf16.msra.mxu0 %v445
        %839 = vmatprep.subr.bf16.mxu0 %v448
        %840 = vmatpush1.bf16.msra.mxu0 %v447
        %841 = vmatprep.subr.bf16.mxu0 %v450
        %842 = vmatpush1.bf16.msra.mxu0 %v449
        %843 = vmatprep.subr.bf16.mxu0 %v452
        %844 = vmatpush1.bf16.msra.mxu0 %v451
        %845 = vmatprep.subr.bf16.mxu0 %v454
        %846 = vmatpush1.bf16.msra.mxu0 %v453
        %847 = vmatprep.subr.bf16.mxu0 %v456
        %848 = vmatpush1.bf16.msra.mxu0 %v455
        %849 = vmatprep.subr.bf16.mxu0 %v458
        %850 = vmatpush1.bf16.msra.mxu0 %v457
        %851 = vmatprep.subr.bf16.mxu0 %v460
        %852 = vmatpush1.bf16.msra.mxu0 %v459
        %853 = vmatprep.subr.bf16.mxu0 0
        %854 = vmatpush1.bf16.msra.mxu0 0
        %855 = vmatprep.subr.bf16.mxu0 0
        %856 = vmatpush1.bf16.msra.mxu0 0
        %857 = vmatprep.subr.bf16.mxu0 0
        %858 = vmatpush1.bf16.msra.mxu0 0
        %859 = vmatprep.subr.bf16.mxu0 0
        %860 = vmatpush1.bf16.msra.mxu0 0
        %861 = vmatprep.subr.bf16.mxu0 0
        %862 = vmatpush1.bf16.msra.mxu0 0
        %863 = vmatprep.subr.bf16.mxu0 0
        %864 = vmatpush1.bf16.msra.mxu0 0
        %865 = vmatprep.mubr.bf16.mxu0 %v825
        %866 = vmatmul.mubr.bf16.gmra.mrb[0].mxu0 %v815
        %v867 = vpop.f32.mrb[0].mxu0
        %v868 = vadd.f32 0.0, %v867
        %v869 = vpop.f32.mrb[0].mxu0
        %v870 = vadd.f32 0.0, %v869
        %v871 = vpop.f32.mrb[0].mxu0
        %v872 = vadd.f32 0.0, %v871
        %v873 = vpop.f32.mrb[0].mxu0
        %v874 = vadd.f32 0.0, %v873
        %875 = vmatprep.mubr.bf16.mxu0 %v828
        %876 = vmatmul.mubr.bf16.gmra.mrb[0].mxu0 %v817
        %v877 = vpop.f32.mrb[0].mxu0
        %v878 = vadd.f32 0.0, %v877
        %v879 = vpop.f32.mrb[0].mxu0
        %v880 = vadd.f32 0.0, %v879
        %v881 = vpop.f32.mrb[0].mxu0
        %v882 = vadd.f32 0.0, %v881
        %v883 = vpop.f32.mrb[0].mxu0
        %v884 = vadd.f32 0.0, %v883
        %885 = vmatprep.mubr.bf16.mxu0 %v831
        %886 = vmatmul.mubr.bf16.gmra.mrb[0].mxu0 %v819
        %v887 = vpop.f32.mrb[0].mxu0
        %v888 = vadd.f32 0.0, %v887
        %v889 = vpop.f32.mrb[0].mxu0
        %v890 = vadd.f32 0.0, %v889
        %v891 = vpop.f32.mrb[0].mxu0
        %v892 = vadd.f32 0.0, %v891
        %v893 = vpop.f32.mrb[0].mxu0
        %v894 = vadd.f32 0.0, %v893
        %895 = vdwg.mxu0
        %v896 = vmax.f32 %v778, %v868
        %v897 = vmax.f32 %v779, %v870
        %v898 = vmax.f32 %v780, %v872
        %v899 = vmax.f32 %v781, %v874
        %v900 = vmax.f32 %v782, %v878
        %v901 = vmax.f32 %v783, %v880
        %v902 = vmax.f32 %v784, %v882
        %v903 = vmax.f32 %v785, %v884
        %v904 = vmax.f32 %v786, %v888
        %v905 = vmax.f32 %v787, %v890
        %v906 = vmax.f32 %v788, %v892
        %v907 = vmax.f32 %v789, %v894
        %s908 = scalar_lea.vmem %s297, 192 [#allocation2]
        %v909 = vld [vmem:[%s908] sm:$0xff]
        %v910 = vld [vmem:[%s908 + $0x8] sm:$0xff]
        %v911 = vld [vmem:[%s908 + $0x10] sm:$0xff]
        %v912 = vld [vmem:[%s908 + $0x18] sm:$0xff]
        %v913 = vld [vmem:[%s908 + $0x20] sm:$0xff]
        %v914 = vld [vmem:[%s908 + $0x28] sm:$0xff]
        %v921 = vunpack.c.l.b16 %v909
        %v922 = vunpack.c.h.b16 %v909
        %v923 = vunpack.c.l.b16 %v910
        %v924 = vunpack.c.h.b16 %v910
        %v925 = vunpack.c.l.b16 %v911
        %v926 = vunpack.c.h.b16 %v911
        %v927 = vunpack.c.l.b16 %v912
        %v928 = vunpack.c.h.b16 %v912
        %v929 = vunpack.c.l.b16 %v913
        %v930 = vunpack.c.h.b16 %v913
        %v931 = vunpack.c.l.b16 %v914
        %v932 = vunpack.c.h.b16 %v914
        %v933 = vpack.c.b16 %v923, %v921
        %v934 = vpack.c.b16 %v924, %v922
        %v935 = vpack.c.b16 %v927, %v925
        %v936 = vpack.c.b16 %v928, %v926
        %v937 = vpack.c.b16 %v931, %v929
        %v938 = vpack.c.b16 %v932, %v930
        %v943 = vsel %vm481, %v934, 0
        %v946 = vsel %vm481, %v936, 0
        %v949 = vsel %vm481, %v938, 0
        %951 = vmatprep.subr.bf16.mxu0 %v442
        %952 = vmatpush1.bf16.msra.mxu0 %v441
        %953 = vmatprep.subr.bf16.mxu0 %v444
        %954 = vmatpush1.bf16.msra.mxu0 %v443
        %955 = vmatprep.subr.bf16.mxu0 %v446
        %956 = vmatpush1.bf16.msra.mxu0 %v445
        %957 = vmatprep.subr.bf16.mxu0 %v448
        %958 = vmatpush1.bf16.msra.mxu0 %v447
        %959 = vmatprep.subr.bf16.mxu0 %v450
        %960 = vmatpush1.bf16.msra.mxu0 %v449
        %961 = vmatprep.subr.bf16.mxu0 %v452
        %962 = vmatpush1.bf16.msra.mxu0 %v451
        %963 = vmatprep.subr.bf16.mxu0 %v454
        %964 = vmatpush1.bf16.msra.mxu0 %v453
        %965 = vmatprep.subr.bf16.mxu0 %v456
        %966 = vmatpush1.bf16.msra.mxu0 %v455
        %967 = vmatprep.subr.bf16.mxu0 %v458
        %968 = vmatpush1.bf16.msra.mxu0 %v457
        %969 = vmatprep.subr.bf16.mxu0 %v460
        %970 = vmatpush1.bf16.msra.mxu0 %v459
        %971 = vmatprep.subr.bf16.mxu0 0
        %972 = vmatpush1.bf16.msra.mxu0 0
        %973 = vmatprep.subr.bf16.mxu0 0
        %974 = vmatpush1.bf16.msra.mxu0 0
        %975 = vmatprep.subr.bf16.mxu0 0
        %976 = vmatpush1.bf16.msra.mxu0 0
        %977 = vmatprep.subr.bf16.mxu0 0
        %978 = vmatpush1.bf16.msra.mxu0 0
        %979 = vmatprep.subr.bf16.mxu0 0
        %980 = vmatpush1.bf16.msra.mxu0 0
        %981 = vmatprep.subr.bf16.mxu0 0
        %982 = vmatpush1.bf16.msra.mxu0 0
        %983 = vmatprep.mubr.bf16.mxu0 %v943
        %984 = vmatmul.mubr.bf16.gmra.mrb[0].mxu0 %v933
        %v985 = vpop.f32.mrb[0].mxu0
        %v986 = vadd.f32 0.0, %v985
        %v987 = vpop.f32.mrb[0].mxu0
        %v988 = vadd.f32 0.0, %v987
        %v989 = vpop.f32.mrb[0].mxu0
        %v990 = vadd.f32 0.0, %v989
        %v991 = vpop.f32.mrb[0].mxu0
        %v992 = vadd.f32 0.0, %v991
        %993 = vmatprep.mubr.bf16.mxu0 %v946
        %994 = vmatmul.mubr.bf16.gmra.mrb[0].mxu0 %v935
        %v995 = vpop.f32.mrb[0].mxu0
        %v996 = vadd.f32 0.0, %v995
        %v997 = vpop.f32.mrb[0].mxu0
        %v998 = vadd.f32 0.0, %v997
        %v999 = vpop.f32.mrb[0].mxu0
        %v1000 = vadd.f32 0.0, %v999
        %v1001 = vpop.f32.mrb[0].mxu0
        %v1002 = vadd.f32 0.0, %v1001
        %1003 = vmatprep.mubr.bf16.mxu0 %v949
        %1004 = vmatmul.mubr.bf16.gmra.mrb[0].mxu0 %v937
        %v1005 = vpop.f32.mrb[0].mxu0
        %v1006 = vadd.f32 0.0, %v1005
        %v1007 = vpop.f32.mrb[0].mxu0
        %v1008 = vadd.f32 0.0, %v1007
        %v1009 = vpop.f32.mrb[0].mxu0
        %v1010 = vadd.f32 0.0, %v1009
        %v1011 = vpop.f32.mrb[0].mxu0
        %v1012 = vadd.f32 0.0, %v1011
        %1013 = vdwg.mxu0
        %v1014 = vmax.f32 %v896, %v986
        %v1015 = vmax.f32 %v897, %v988
        %v1016 = vmax.f32 %v898, %v990
        %v1017 = vmax.f32 %v899, %v992
        %v1018 = vmax.f32 %v900, %v996
        %v1019 = vmax.f32 %v901, %v998
        %v1020 = vmax.f32 %v902, %v1000
        %v1021 = vmax.f32 %v903, %v1002
        %v1022 = vmax.f32 %v904, %v1006
        %v1023 = vmax.f32 %v905, %v1008
        %v1024 = vmax.f32 %v906, %v1010
        %v1025 = vmax.f32 %v907, %v1012
        %v1026 = vld [vmem:[%s2] sm:$0x3]
        %v1028 = vlaneseq
        %v1029 = vshrl.u32 %v1028, 7
        %v1030 = vsub.s32 0, %v1029
        %v1031 = vrot.slane %v1026, %v1030
        %v1032 = vlaneseq
        %v1033 = vshrl.u32 %v1032, 7
        %v1034 = vsub.s32 1, %v1033
        %v1035 = vrot.slane %v1026, %v1034
        %v1038 = vadd.f32 %v1014, %v1031
        %v1039 = vadd.f32 %v1015, %v1035
        %v1040 = vadd.f32 %v1016, %v1031
        %v1041 = vadd.f32 %v1017, %v1035
        %v1042 = vadd.f32 %v1018, %v1031
        %v1043 = vadd.f32 %v1019, %v1035
        %v1044 = vadd.f32 %v1020, %v1031
        %v1045 = vadd.f32 %v1021, %v1035
        %v1046 = vadd.f32 %v1022, %v1031
        %v1047 = vadd.f32 %v1023, %v1035
        %v1048 = vadd.f32 %v1024, %v1031
        %v1049 = vadd.f32 %v1025, %v1035
        %v1050 = vmax.f32 %v1038, 0.0
        %v1051 = vmax.f32 %v1039, 0.0
        %v1052 = vmax.f32 %v1040, 0.0
        %v1053 = vmax.f32 %v1041, 0.0
        %v1054 = vmax.f32 %v1042, 0.0
        %v1055 = vmax.f32 %v1043, 0.0
        %v1056 = vmax.f32 %v1044, 0.0
        %v1057 = vmax.f32 %v1045, 0.0
        %v1058 = vmax.f32 %v1046, 0.0
        %v1059 = vmax.f32 %v1047, 0.0
        %v1060 = vmax.f32 %v1048, 0.0
        %v1061 = vmax.f32 %v1049, 0.0
        %v1062 = vpack.c.bf16 %v1052, %v1050
        %v1063 = vpack.c.bf16 %v1053, %v1051
        %v1064 = vpack.c.bf16 %v1056, %v1054
        %v1065 = vpack.c.bf16 %v1057, %v1055
        %v1066 = vpack.c.bf16 %v1060, %v1058
        %v1067 = vpack.c.bf16 %v1061, %v1059
        %v1074 = vunpack.c.l.b16 %v1062
        %v1075 = vunpack.c.l.b16 %v1063
        %v1076 = vunpack.c.h.b16 %v1062
        %v1077 = vunpack.c.h.b16 %v1063
        %v1078 = vunpack.c.l.b16 %v1064
        %v1079 = vunpack.c.l.b16 %v1065
        %v1080 = vunpack.c.h.b16 %v1064
        %v1081 = vunpack.c.h.b16 %v1065
        %v1082 = vunpack.c.l.b16 %v1066
        %v1083 = vunpack.c.l.b16 %v1067
        %v1084 = vunpack.c.h.b16 %v1066
        %v1085 = vunpack.c.h.b16 %v1067
        %v1086 = vpack.c.b16 %v1075, %v1074
        %v1087 = vpack.c.b16 %v1077, %v1076
        %v1088 = vpack.c.b16 %v1079, %v1078
        %v1089 = vpack.c.b16 %v1081, %v1080
        %v1090 = vpack.c.b16 %v1083, %v1082
        %v1091 = vpack.c.b16 %v1085, %v1084
        %vm1098 = vcmask 1043456
        %vm1099 = vcmask 523268
        %vm1100 = vmor %vm1099, %vm1098
        %1101 = vst.msk [vmem:[%s325] sm:$0xff] %vm1100, %v1086
        %1102 = vst.msk [vmem:[%s325 + $0x8] sm:$0xff] %vm1100, %v1087
        %1103 = vst.msk [vmem:[%s325 + $0x10] sm:$0xff] %vm1100, %v1088
        %1104 = vst.msk [vmem:[%s325 + $0x18] sm:$0xff] %vm1100, %v1089
        %1105 = vst.msk [vmem:[%s325 + $0x20] sm:$0xff] %vm1100, %v1090
        %1106 = vst.msk [vmem:[%s325 + $0x28] sm:$0xff] %vm1100, %v1091
        %s1107 = smul.u32 6, %s14
        %p1108 = scmp.lt.s32.totalorder %s1107, 17
        %s1109 = scalar_select %p1108, %s1107, 17
        %s1110 = smul.addr %s1109, 2
        %s1111 = smul.addr %s1110, 4
        %s1112 = scalar_lea.vmem %s3, %s1111
        // Predicated region
        $region71: #{special_block_forward.1} parent=65 // pred_check
          %p1113 = pneg %p100
        $region72: #{special_block_forward.1} parent=65 // pred_check_branch
          %1115 = sbr.rel (%p1113) target = $region74
        $region73: #{special_block_forward.1} parent=65 // pred_region
          %s1116 = smul.u32 6, %s14
        $region74: #{special_block_forward.1} parent=65 // pred_fallthru
          _
      $region66: #{special_block_forward.1} parent=5 // pred_fallthru
        _
      %p1117 = scmp.le.s32.totalorder 2, %s9
      // Predicated region
      $region75: #{special_block_forward.1} parent=5 // pred_check
        %p1118 = pneg %p1117
      $region76: #{special_block_forward.1} parent=5 // pred_check_branch
        %1120 = sbr.rel (%p1118) target = $region78
      $region77: #{special_block_forward.1} parent=5 // pred_region
        %s1121 = ssub.s32 %s9, 2
        // Predicated region
        $region79: #{special_block_forward.1} parent=77 // pred_check
          %p1122 = pneg %p106
        $region80: #{special_block_forward.1} parent=77 // pred_check_branch
          %1124 = sbr.rel (%p1122) target = $region82
        $region81: #{special_block_forward.1} parent=77 // pred_region
          %s1125 = smul.u32 6, %s15
          %p1126 = scmp.lt.s32.totalorder %s1125, 17
          %s1127 = scalar_select %p1126, %s1125, 17
          %s1128 = smul.addr %s1127, 2
          %s1129 = smul.addr %s1128, 4
          %s1130 = scalar_lea.vmem %s3, %s1129
        $region82: #{special_block_forward.1} parent=77 // pred_fallthru
          _
      $region78: #{special_block_forward.1} parent=5 // pred_fallthru
        _
    $region6: #{special_block_forward.1} parent=1 // loop_footer
      %s13 = sadd.s32 1, %s9
    $region7: #{special_block_forward.1} parent=1 // loop_footer_branch
      %8 = sbr.rel target = $region3
    $region8: #{special_block_forward.1} parent=1 // loop_exit
      _

</llo_original>
